<compile_context>
chip_gen: v6e
topology: v6e:2x2x1
jax: 0.10.0
libtpu: 0.0.40
codegen_flags: <defaults>
</compile_context>

<pallas_src>
import functools

import jax
import jax.numpy as jnp
from jax import lax
from jax.experimental import pallas as pl
from jax.experimental.pallas import tpu as pltpu


_MIN_GRID_STEPS = 8            # >= 4 grid steps per TensorCore on 2-TC (v7x) parts.
_TARGET_BLOCK_BYTES = 4 << 20  # per (R, D) buffer; >=~1-2 MiB already hits HBM roofline.
_FIXED_HEADROOM = 4 << 20      # Mosaic internal scratch / misc.


def _round_down8(v):
    return (v // 8) * 8


def _vmem_budget_bytes():
    """Usable VMEM, derived from the running chip generation (v5e/v6e: 128 MiB, v7x: 64 MiB)."""
    try:
        cap = int(pltpu.get_tpu_info().vmem_capacity_bytes)
    except Exception:
        cap = 64 << 20  # conservative fallback: v7x per-TensorCore VMEM
    return min(cap - (8 << 20), int(cap * 0.85))


# --------------------------------------------------------------------------------------
# Single-block path: the whole row (length D) is resident in VMEM.
# --------------------------------------------------------------------------------------
def _layernorm2d_kernel(x_ref, g_ref, b_ref, o_ref, *, eps, inv_d):
    # NOTE: when N % R != 0 the trailing rows of the last block hold padding; their
    # statistics are garbage.  This is safe only because Pallas masks the out-of-bounds
    # rows on writeback — keep that invariant if refactoring to manual DMA.
    x = x_ref[...].astype(jnp.float32)
    mean = jnp.sum(x, axis=-1, keepdims=True) * inv_d
    xc = x - mean                                   # two-pass variance (VMEM-resident, ~free)
    var = jnp.sum(xc * xc, axis=-1, keepdims=True) * inv_d
    rstd = lax.rsqrt(var + eps)
    y = xc * rstd
    y = y * g_ref[...].astype(jnp.float32) + b_ref[...].astype(jnp.float32)
    o_ref[...] = y.astype(o_ref.dtype)


def _single_block_path(x2d, g2d, b2d, eps, rows, vmem_limit):
    n, d = x2d.shape
    isz = x2d.dtype.itemsize
    kernel = functools.partial(_layernorm2d_kernel, eps=float(eps), inv_d=1.0 / float(d))
    return pl.pallas_call(
        kernel,
        out_shape=jax.ShapeDtypeStruct((n, d), x2d.dtype),
        grid_spec=pltpu.PrefetchScalarGridSpec(
            num_scalar_prefetch=0,
            grid=(pl.cdiv(n, rows),),
            in_specs=[
                pl.BlockSpec((rows, d), lambda i: (i, 0)),
                # TODO(synk): single-buffer gamma/beta (pipeline_mode=pl.Buffered(1)); the
                # double-buffer cost only matters for large D, which takes the chunked path.
                pl.BlockSpec((1, d), lambda i: (0, 0)),
                pl.BlockSpec((1, d), lambda i: (0, 0)),
            ],
            out_specs=pl.BlockSpec((rows, d), lambda i: (i, 0)),
        ),
        compiler_params=pltpu.CompilerParams(
            dimension_semantics=("parallel",),
            vmem_limit_bytes=vmem_limit,
        ),
        cost_estimate=pl.CostEstimate(
            flops=7 * n * d,
            transcendentals=n,
            bytes_accessed=2 * n * d * isz + 2 * d * 4,
        ),
    )(x2d, g2d, b2d)


def _choose_block_rows(n, d, isz, budget, per_row, fixed):
    """Rows per block: multiple of 8 (or full batch), VMEM-feasible, ~TARGET-byte blocks,
    and small enough that the grid has >= _MIN_GRID_STEPS steps when the batch allows it
    (so the BlockSpec pipeline has prologue/epilogue DMA to hide)."""
    if n <= 8:
        return n
    vmem_cap = max(8, _round_down8((budget - fixed - _FIXED_HEADROOM) // per_row))
    steps_cap = max(8, _round_down8(n // _MIN_GRID_STEPS))
    bytes_cap = max(8, ((-(-_TARGET_BLOCK_BYTES // (d * isz)) + 7) // 8) * 8)
    return min(vmem_cap, steps_cap, bytes_cap)


# --------------------------------------------------------------------------------------
# Chunked-D path: D is streamed in (rows, Dc) chunks; stats pass + normalize pass.
# --------------------------------------------------------------------------------------
def _stats_chunk_kernel(x_ref, mean_ref, rstd_ref, mean_sc, m2_sc, *, eps, d, dc):
    j = pl.program_id(1)

    @pl.when(j == 0)
    def _():
        mean_sc[...] = jnp.zeros_like(mean_sc)
        m2_sc[...] = jnp.zeros_like(m2_sc)

    x = x_ref[...].astype(jnp.float32)                 # (R, Dc)
    # The last chunk may run past D: mask those lanes out of the statistics.
    lane = lax.broadcasted_iota(jnp.int32, x.shape, 1)
    valid = (j * dc + lane) < d
    cnt = jnp.minimum(dc, d - j * dc).astype(jnp.float32)

    s1 = jnp.sum(jnp.where(valid, x, 0.0), axis=-1, keepdims=True)
    m_c = s1 / cnt
    dev = jnp.where(valid, x - m_c, 0.0)
    m2_c = jnp.sum(dev * dev, axis=-1, keepdims=True)

    # Chan's parallel combine of (mean, M2) — previous chunks are always full (= dc elems).
    n_a = (j * dc).astype(jnp.float32)
    n_ab = n_a + cnt
    delta = m_c - mean_sc[...]
    mean_sc[...] = mean_sc[...] + delta * (cnt / n_ab)
    m2_sc[...] = m2_sc[...] + m2_c + (delta * delta) * (n_a * cnt / n_ab)

    @pl.when(j == pl.num_programs(1) - 1)
    def _():
        var = jnp.maximum(m2_sc[...] / jnp.float32(d), 0.0)
        mean_ref[...] = mean_sc[...]
        rstd_ref[...] = lax.rsqrt(var + eps)


def _norm_chunk_kernel(x_ref, mean_ref, rstd_ref, g_ref, b_ref, o_ref):
    x = x_ref[...].astype(jnp.float32)
    y = (x - mean_ref[...]) * rstd_ref[...]
    y = y * g_ref[...].astype(jnp.float32) + b_ref[...].astype(jnp.float32)
    o_ref[...] = y.astype(o_ref.dtype)


def _chunked_path(x2d, g2d, b2d, eps, rows, dc, vmem_limit):
    n, d = x2d.shape
    grid = (pl.cdiv(n, rows), pl.cdiv(d, dc))

    stats = functools.partial(_stats_chunk_kernel, eps=float(eps), d=d, dc=dc)
    mean, rstd = pl.pallas_call(
        stats,
        out_shape=(jax.ShapeDtypeStruct((n, 1), jnp.float32),
                   jax.ShapeDtypeStruct((n, 1), jnp.float32)),
        grid_spec=pltpu.PrefetchScalarGridSpec(
            num_scalar_prefetch=0,
            grid=grid,
            in_specs=[pl.BlockSpec((rows, dc), lambda i, j: (i, j))],
            out_specs=[pl.BlockSpec((rows, 1), lambda i, j: (i, 0)),
                       pl.BlockSpec((rows, 1), lambda i, j: (i, 0))],
            scratch_shapes=[pltpu.VMEM((rows, 1), jnp.float32),
                            pltpu.VMEM((rows, 1), jnp.float32)],
        ),
        compiler_params=pltpu.CompilerParams(
            dimension_semantics=("parallel", "arbitrary"),
            vmem_limit_bytes=vmem_limit,
        ),
    )(x2d)

    out2d = pl.pallas_call(
        _norm_chunk_kernel,
        out_shape=jax.ShapeDtypeStruct((n, d), x2d.dtype),
        grid_spec=pltpu.PrefetchScalarGridSpec(
            num_scalar_prefetch=0,
            grid=grid,
            in_specs=[
                pl.BlockSpec((rows, dc), lambda i, j: (i, j)),
                pl.BlockSpec((rows, 1), lambda i, j: (i, 0)),
                pl.BlockSpec((rows, 1), lambda i, j: (i, 0)),
                pl.BlockSpec((1, dc), lambda i, j: (0, j)),
                pl.BlockSpec((1, dc), lambda i, j: (0, j)),
            ],
            out_specs=pl.BlockSpec((rows, dc), lambda i, j: (i, j)),
        ),
        compiler_params=pltpu.CompilerParams(
            dimension_semantics=("parallel", "parallel"),
            vmem_limit_bytes=vmem_limit,
        ),
    )(x2d, mean, rstd, g2d, b2d)
    return out2d


# --------------------------------------------------------------------------------------
# Public wrapper (dispatch + host-side layout)
# --------------------------------------------------------------------------------------
def layernorm2d(x, gamma, beta, epsilon=1e-5, *, d_chunk=None):
    """Pallas TPU implementation of LayerNorm2D.forward (NCHW input).

    `d_chunk` (multiple of 128, or >= D) forces the chunked-D path; default is automatic
    based on the per-generation VMEM budget.
    """
    assert x.ndim == 4
    N, C, H, W = x.shape
    assert gamma.shape == (C,) and beta.shape == (C,)
    D = C * H * W
    isz = x.dtype.itemsize

    x2d = x.reshape(N, D)  # no-copy collapse of NCHW
    # Per-channel -> per-element affine as a cheap broadcast (no gather, unlike jnp.repeat).
    g2d = jnp.broadcast_to(gamma.astype(jnp.float32)[:, None], (C, H * W)).reshape(1, D)
    b2d = jnp.broadcast_to(beta.astype(jnp.float32)[:, None], (C, H * W)).reshape(1, D)
    # TODO(synk): if D % 128 != 0 the trailing lane group uses masked stores; pad D to a
    # multiple of 128 only if such ragged shapes show up in practice.

    budget = _vmem_budget_bytes()
    # Per-row VMEM: input + output double-buffered, plus f32 upcast/centered temporaries.
    per_row = 2 * 2 * D * isz + 2 * D * 4
    fixed = 2 * (2 * D * 4)  # gamma + beta: (1, D) f32, double-buffered each
    rows_min = min(8, N)
    fits_single = fixed + per_row * rows_min + _FIXED_HEADROOM <= budget

    if d_chunk is None and fits_single:
        rows = _choose_block_rows(N, D, isz, budget, per_row, fixed)
        needed = fixed + per_row * rows + _FIXED_HEADROOM
        vmem_limit = int(min(max(needed, 16 << 20), budget))
        out2d = _single_block_path(x2d, g2d, b2d, epsilon, rows, vmem_limit)
    else:
        rows = min(8, N)
        if d_chunk is not None:
            assert d_chunk >= D or d_chunk % 128 == 0, "d_chunk must be a multiple of 128"
            dc = min(int(d_chunk), D)
        else:
            per_col = 4 * rows * isz + 2 * rows * 4 + 16   # x in/out + f32 temps + gamma/beta
            dc_budget = max(128, (budget - _FIXED_HEADROOM) // per_col // 128 * 128)
            dc_target = max(128, _TARGET_BLOCK_BYTES // (rows * isz) // 128 * 128)
            dc = min(dc_budget, dc_target)
            if dc >= D:
                dc = D
        needed = (4 * rows * dc * isz) + (2 * rows * dc * 4) + 2 * (2 * dc * 4) + _FIXED_HEADROOM
        vmem_limit = int(min(max(needed, 16 << 20), budget))
        out2d = _chunked_path(x2d, g2d, b2d, epsilon, rows, dc, vmem_limit)

    return out2d.reshape(N, C, H, W)


def _reference(x, gamma, beta, epsilon=1e-5):
    x32 = x.astype(jnp.float32)
    mean = jnp.mean(x32, axis=(1, 2, 3), keepdims=True)
    var = jnp.mean((x32 - mean) ** 2, axis=(1, 2, 3), keepdims=True)
    out = (x32 - mean) / jnp.sqrt(var + epsilon)
    out = gamma.reshape(1, -1, 1, 1) * out + beta.reshape(1, -1, 1, 1)
    return out.astype(x.dtype)


if __name__ == "__main__":
    key = jax.random.PRNGKey(0)
    kx, kg, kb = jax.random.split(key, 3)

    N, C, H, W = 2, 4, 16, 16
    x = jax.random.normal(kx, (N, C, H, W), dtype=jnp.float32)
    # Non-trivial affine params to exercise the gamma/beta path.
    gamma = 1.0 + 0.1 * jax.random.normal(kg, (C,), dtype=jnp.float32)
    beta = 0.1 * jax.random.normal(kb, (C,), dtype=jnp.float32)

    ref = _reference(x, gamma, beta, epsilon=1e-5)

    # Single-block path (default for this shape).
    out = jax.block_until_ready(layernorm2d(x, gamma, beta, epsilon=1e-5))
    assert out.shape == x.shape
    assert jnp.allclose(out, ref, atol=1e-5, rtol=1e-5), "single-block path mismatch"

    # Force the chunked-D (large C*H*W) path on the same small problem.
    out_c = jax.block_until_ready(layernorm2d(x, gamma, beta, epsilon=1e-5, d_chunk=256))
    assert jnp.allclose(out_c, ref, atol=1e-5, rtol=1e-5), "chunked path mismatch"

    print("KERNEL_OK")
</pallas_src>

<mosaic_0001>
module attributes {stable_mosaic.version = 11 : i64} {
  func.func @_layernorm2d_kernel(%arg0: i32, %arg1: memref<2x1024xf32, #tpu.memory_space<vmem>>, %arg2: memref<1x1024xf32, #tpu.memory_space<vmem>>, %arg3: memref<1x1024xf32, #tpu.memory_space<vmem>>, %arg4: memref<2x1024xf32, #tpu.memory_space<vmem>>) attributes {dimension_semantics = [#tpu.dimension_semantics<parallel>], iteration_bounds = array<i64: 1>, scalar_prefetch = 0 : i64, scratch_operands = 0 : i64, tpu.core_type = #tpu.core_type<tc>, window_params = [{transform_indices = @transform_0, window_bounds = array<i64: 2, 1024>}, {pipeline_mode = #tpu.pipeline_mode<synchronous>, transform_indices = @transform_1, window_bounds = array<i64: 1, 1024>}, {pipeline_mode = #tpu.pipeline_mode<synchronous>, transform_indices = @transform_2, window_bounds = array<i64: 1, 1024>}, {transform_indices = @transform_3, window_bounds = array<i64: 2, 1024>}]} {
    %c0 = arith.constant 0 : index
    %c0_0 = arith.constant 0 : index
    %0 = vector.load %arg1[%c0, %c0_0] : memref<2x1024xf32, #tpu.memory_space<vmem>>, vector<2x1024xf32>
    %cst = arith.constant dense<0.000000e+00> : vector<2xf32>
    %1 = vector.multi_reduction <add>, %0, %cst [1] : vector<2x1024xf32> to vector<2xf32>
    %2 = vector.shape_cast %1 : vector<2xf32> to vector<2x1xf32>
    %cst_1 = arith.constant 9.765625E-4 : f32
    %3 = vector.broadcast %cst_1 : f32 to vector<2x1xf32>
    %4 = arith.mulf %2, %3 : vector<2x1xf32>
    %5 = vector.broadcast %4 : vector<2x1xf32> to vector<2x1024xf32>
    %6 = arith.subf %0, %5 : vector<2x1024xf32>
    %7 = arith.mulf %6, %6 : vector<2x1024xf32>
    %cst_2 = arith.constant dense<0.000000e+00> : vector<2xf32>
    %8 = vector.multi_reduction <add>, %7, %cst_2 [1] : vector<2x1024xf32> to vector<2xf32>
    %9 = vector.shape_cast %8 : vector<2xf32> to vector<2x1xf32>
    %cst_3 = arith.constant 9.765625E-4 : f32
    %10 = vector.broadcast %cst_3 : f32 to vector<2x1xf32>
    %11 = arith.mulf %9, %10 : vector<2x1xf32>
    %cst_4 = arith.constant 9.99999974E-6 : f32
    %12 = vector.broadcast %cst_4 : f32 to vector<2x1xf32>
    %13 = arith.addf %11, %12 : vector<2x1xf32>
    %14 = math.rsqrt %13 : vector<2x1xf32>
    %15 = vector.broadcast %14 : vector<2x1xf32> to vector<2x1024xf32>
    %16 = arith.mulf %6, %15 : vector<2x1024xf32>
    %c0_5 = arith.constant 0 : index
    %c0_6 = arith.constant 0 : index
    %17 = vector.load %arg2[%c0_5, %c0_6] : memref<1x1024xf32, #tpu.memory_space<vmem>>, vector<1x1024xf32>
    %18 = vector.broadcast %17 : vector<1x1024xf32> to vector<2x1024xf32>
    %19 = arith.mulf %16, %18 : vector<2x1024xf32>
    %c0_7 = arith.constant 0 : index
    %c0_8 = arith.constant 0 : index
    %20 = vector.load %arg3[%c0_7, %c0_8] : memref<1x1024xf32, #tpu.memory_space<vmem>>, vector<1x1024xf32>
    %21 = vector.broadcast %20 : vector<1x1024xf32> to vector<2x1024xf32>
    %22 = arith.addf %19, %21 : vector<2x1024xf32>
    %c0_9 = arith.constant 0 : index
    %c0_10 = arith.constant 0 : index
    %23 = vector.load %arg4[%c0_9, %c0_10] : memref<2x1024xf32, #tpu.memory_space<vmem>>, vector<2x1024xf32>
    tpu.vector_store %arg4[%c0_9, %c0_10], %22 {strides = array<i32>} : memref<2x1024xf32, #tpu.memory_space<vmem>>, vector<2x1024xf32>,
    return
  }
  func.func @transform_0(%arg0: i32) -> (i32, i32) {
    %c0_i32 = arith.constant 0 : i32
    %c0_i32_0 = arith.constant 0 : i32
    return %arg0, %c0_i32 : i32, i32
  }
  func.func @transform_1(%arg0: i32) -> (i32, i32) {
    %c0_i32 = arith.constant 0 : i32
    %c0_i32_0 = arith.constant 0 : i32
    %c0_i32_1 = arith.constant 0 : i32
    return %c0_i32, %c0_i32_0 : i32, i32
  }
  func.func @transform_2(%arg0: i32) -> (i32, i32) {
    %c0_i32 = arith.constant 0 : i32
    %c0_i32_0 = arith.constant 0 : i32
    %c0_i32_1 = arith.constant 0 : i32
    return %c0_i32, %c0_i32_0 : i32, i32
  }
  func.func @transform_3(%arg0: i32) -> (i32, i32) {
    %c0_i32 = arith.constant 0 : i32
    %c0_i32_0 = arith.constant 0 : i32
    return %arg0, %c0_i32 : i32, i32
  }
}

</mosaic_0001>

<llo_original>
// kernel: tpu_custom_call.1
$region0: #{tpu_custom_call.1}
  #allocation0 [shape = 'u32[]', space=smem, size = 0x4, offset = 0x4, fixed_abs, tag = 'smem constant byte address 0x4 - core index']
  #allocation1 [shape = 'u32[144,128]{1,0:T(1,128)}', space=vmem, size = 0x12000, scoped, tag = 'internal scratch']
  %s0 = inlined_call_operand.hbm [shape: f32[2,1024], index: 0, kind: input, shape index: {}]
  %s1 = inlined_call_operand.hbm [shape: f32[1,1024], index: 1, kind: input, shape index: {}]
  %s2 = inlined_call_operand.hbm [shape: f32[1,1024], index: 2, kind: input, shape index: {}]
  %s3 = inlined_call_operand.hbm [shape: f32[2,1024], index: 3, kind: output, shape index: {}]
  %s4 = sld [smem:[#allocation0]]
  $region34: #{tpu_custom_call.1} parent=0
    _
  %s6 = ssub.s32 1, %s4
  %s7 = scalar_select 0, %s6, %s4
  $region1: #{tpu_custom_call.1} parent=0
    #allocation2 [shape = 'u8[8192]{0}', space=vmem, size = 0x2000, scoped, tag = 'input window, operand 0, single buffered']
    #allocation3 [shape = 's32[1]{0}', space=sflag, size = 0x4, scoped, tag = 'scoped memory for tpu_custom_call.1']
    #allocation4 [shape = 's32[1]{0}', space=sflag, size = 0x4, scoped, tag = 'scoped memory for tpu_custom_call.1']
    #allocation5 [shape = 'u8[4096]{0}', space=vmem, size = 0x1000, scoped, tag = 'input window, operand 1, single buffered']
    #allocation6 [shape = 's32[1]{0}', space=sflag, size = 0x4, scoped, tag = 'scoped memory for tpu_custom_call.1']
    #allocation7 [shape = 'u8[4096]{0}', space=vmem, size = 0x1000, scoped, tag = 'input window, operand 2, single buffered']
    #allocation8 [shape = 'u8[8192]{0}', space=vmem, size = 0x2000, scoped, tag = 'output window, operand 0, single buffered']
    %8 = vsyncpa [#allocation3], 0
    %9 = vsyncpa [#allocation6], 0
    %10 = vsyncpa [#allocation4], 0
    // Predicated region
    $region2: #{tpu_custom_call.1} parent=1 // pred_check
      _
    $region3: #{tpu_custom_call.1} parent=1 // pred_check_branch
      %12 = sbr.rel (0) target = $region5
    $region4: #{tpu_custom_call.1} parent=1 // pred_region
      %s14 = ssub.s32 256, 256
      %15 = vsyncadd [#allocation3], %s14
      %s17 = sshll.u32 [#allocation2], 4
      %s18 = int_to_ptr.vmem [resolvable:$true] %s17
      %20 = dma.hbm_to_vmem [thread:$0]  %s0, 256, %s18, [#allocation3]
    $region5: #{tpu_custom_call.1} parent=1 // pred_fallthru
      _
    // Predicated region
    $region6: #{tpu_custom_call.1} parent=1 // pred_check
      _
    $region7: #{tpu_custom_call.1} parent=1 // pred_check_branch
      %22 = sbr.rel (0) target = $region9
    $region8: #{tpu_custom_call.1} parent=1 // pred_region
      %s24 = ssub.s32 128, 128
      %25 = vsyncadd [#allocation6], %s24
      %s27 = sshll.u32 [#allocation5], 4
      %s28 = int_to_ptr.vmem [resolvable:$true] %s27
      %30 = dma.hbm_to_vmem [thread:$0]  %s1, 128, %s28, [#allocation6]
    $region9: #{tpu_custom_call.1} parent=1 // pred_fallthru
      _
    // Predicated region
    $region10: #{tpu_custom_call.1} parent=1 // pred_check
      _
    $region11: #{tpu_custom_call.1} parent=1 // pred_check_branch
      %32 = sbr.rel (0) target = $region13
    $region12: #{tpu_custom_call.1} parent=1 // pred_region
      %s34 = ssub.s32 128, 128
      %35 = vsyncadd [#allocation6], %s34
      %s37 = sshll.u32 [#allocation7], 4
      %s38 = int_to_ptr.vmem [resolvable:$true] %s37
      %40 = dma.hbm_to_vmem [thread:$0]  %s2, 128, %s38, [#allocation6]
    $region13: #{tpu_custom_call.1} parent=1 // pred_fallthru
      _
    // Predicated region
    $region14: #{tpu_custom_call.1} parent=1 // pred_check
      _
    $region15: #{tpu_custom_call.1} parent=1 // pred_check_branch
      %42 = sbr.rel (0) target = $region17
    $region16: #{tpu_custom_call.1} parent=1 // pred_region
      %43 = dma.done [#allocation3], 256
    $region17: #{tpu_custom_call.1} parent=1 // pred_fallthru
      _
    // Predicated region
    $region18: #{tpu_custom_call.1} parent=1 // pred_check
      _
    $region19: #{tpu_custom_call.1} parent=1 // pred_check_branch
      %45 = sbr.rel (0) target = $region21
    $region20: #{tpu_custom_call.1} parent=1 // pred_region
      %46 = dma.done [#allocation6], 128
    $region21: #{tpu_custom_call.1} parent=1 // pred_fallthru
      _
    // Predicated region
    $region22: #{tpu_custom_call.1} parent=1 // pred_check
      _
    $region23: #{tpu_custom_call.1} parent=1 // pred_check_branch
      %48 = sbr.rel (0) target = $region25
    $region24: #{tpu_custom_call.1} parent=1 // pred_region
      %49 = dma.done [#allocation6], 128
    $region25: #{tpu_custom_call.1} parent=1 // pred_fallthru
      _
    %v50 = vld [vmem:[#allocation2] sm:$0xff]
    %v51 = vld [vmem:[#allocation2 + $0x8] sm:$0xff]
    %v54 = vcombine.high %v50, %v50
    %v56 = vunpack.c.l.s4 1983009808
    %v57 = vunpack.c.0.s8 %v56
    %v58 = vlaneseq
    %v59 = vshrl.u32 %v58, 7
    %v60 = vsub.s32 %v57, %v59
    %v61 = vrot.slane %v50, %v60
    %v63 = vunpack.c.l.s4 1983009808
    %v64 = vunpack.c.0.s8 %v63
    %v65 = vlaneseq
    %v66 = vshrl.u32 %v65, 7
    %v67 = vsub.s32 %v64, %v66
    %v68 = vrot.slane %v54, %v67
    %v69 = vcombine.high %v61, %v61
    %v70 = vcombine.high %v68, %v68
    %v71 = vcombine.high %v51, %v51
    %v73 = vunpack.c.l.s4 1983009808
    %v74 = vunpack.c.0.s8 %v73
    %v75 = vlaneseq
    %v76 = vshrl.u32 %v75, 7
    %v77 = vsub.s32 %v74, %v76
    %v78 = vrot.slane %v51, %v77
    %v80 = vunpack.c.l.s4 1983009808
    %v81 = vunpack.c.0.s8 %v80
    %v82 = vlaneseq
    %v83 = vshrl.u32 %v82, 7
    %v84 = vsub.s32 %v81, %v83
    %v85 = vrot.slane %v71, %v84
    %v86 = vcombine.high %v78, %v78
    %v87 = vcombine.high %v85, %v85
    %vm96 = vcmask 1041408
    %v97 = vsel %vm96, %v61, 0.0
    %v98 = vsel %vm96, %v69, 0.0
    %v99 = vadd.f32 %v97, %v98
    %v100 = vsel %vm96, %v68, 0.0
    %v101 = vadd.f32 %v99, %v100
    %v102 = vsel %vm96, %v70, 0.0
    %v103 = vadd.f32 %v101, %v102
    %v104 = vsel %vm96, %v78, 0.0
    %v105 = vadd.f32 %v103, %v104
    %v106 = vsel %vm96, %v86, 0.0
    %v107 = vadd.f32 %v105, %v106
    %v108 = vsel %vm96, %v85, 0.0
    %v109 = vadd.f32 %v107, %v108
    %v110 = vsel %vm96, %v87, 0.0
    %v111 = vadd.f32 %v109, %v110
    %112 = vadd.xlane.f32.xlu0 %v111
    %v113 = vpop.xlane.xlu0 %112
    %v114 = vmul.f32 %v113, 0.0009765625
    %v117 = vunpack.c.l.s4 269488144
    %v118 = vunpack.c.0.s8 %v117
    %v119 = vlaneseq
    %v120 = vshrl.u32 %v119, 7
    %v121 = vsub.s32 %v118, %v120
    %v122 = vrot.slane %v114, %v121
    %v124 = vsub.f32 %v50, %v122
    %v125 = vsub.f32 %v51, %v122
    %v126 = vmul.f32 %v124, %v124
    %v127 = vmul.f32 %v125, %v125
    %v130 = vcombine.high %v126, %v126
    %v132 = vunpack.c.l.s4 1983009808
    %v133 = vunpack.c.0.s8 %v132
    %v134 = vlaneseq
    %v135 = vshrl.u32 %v134, 7
    %v136 = vsub.s32 %v133, %v135
    %v137 = vrot.slane %v126, %v136
    %v139 = vunpack.c.l.s4 1983009808
    %v140 = vunpack.c.0.s8 %v139
    %v141 = vlaneseq
    %v142 = vshrl.u32 %v141, 7
    %v143 = vsub.s32 %v140, %v142
    %v144 = vrot.slane %v130, %v143
    %v145 = vcombine.high %v137, %v137
    %v146 = vcombine.high %v144, %v144
    %v147 = vcombine.high %v127, %v127
    %v149 = vunpack.c.l.s4 1983009808
    %v150 = vunpack.c.0.s8 %v149
    %v151 = vlaneseq
    %v152 = vshrl.u32 %v151, 7
    %v153 = vsub.s32 %v150, %v152
    %v154 = vrot.slane %v127, %v153
    %v156 = vunpack.c.l.s4 1983009808
    %v157 = vunpack.c.0.s8 %v156
    %v158 = vlaneseq
    %v159 = vshrl.u32 %v158, 7
    %v160 = vsub.s32 %v157, %v159
    %v161 = vrot.slane %v147, %v160
    %v162 = vcombine.high %v154, %v154
    %v163 = vcombine.high %v161, %v161
    %v172 = vsel %vm96, %v137, 0.0
    %v173 = vsel %vm96, %v145, 0.0
    %v174 = vadd.f32 %v172, %v173
    %v175 = vsel %vm96, %v144, 0.0
    %v176 = vadd.f32 %v174, %v175
    %v177 = vsel %vm96, %v146, 0.0
    %v178 = vadd.f32 %v176, %v177
    %v179 = vsel %vm96, %v154, 0.0
    %v180 = vadd.f32 %v178, %v179
    %v181 = vsel %vm96, %v162, 0.0
    %v182 = vadd.f32 %v180, %v181
    %v183 = vsel %vm96, %v161, 0.0
    %v184 = vadd.f32 %v182, %v183
    %v185 = vsel %vm96, %v163, 0.0
    %v186 = vadd.f32 %v184, %v185
    %187 = vadd.xlane.f32.xlu0 %v186
    %v188 = vpop.xlane.xlu0 %187
    %v189 = vmul.f32 %v188, 0.0009765625
    %v190 = vadd.f32 %v189, 1e-05
    %v191 = vrsqrt.pop %v190
    %v194 = vunpack.c.l.s4 269488144
    %v195 = vunpack.c.0.s8 %v194
    %v196 = vlaneseq
    %v197 = vshrl.u32 %v196, 7
    %v198 = vsub.s32 %v195, %v197
    %v199 = vrot.slane %v191, %v198
    %v201 = vmul.f32 %v124, %v199
    %v202 = vmul.f32 %v125, %v199
    %v203 = vld [vmem:[#allocation5] sm:$0xff]
    %v205 = vlaneseq
    %v206 = vshrl.u32 %v205, 7
    %v207 = vsub.s32 0, %v206
    %v208 = vrot.slane %v203, %v207
    %v209 = vlaneseq
    %v210 = vshrl.u32 %v209, 7
    %v211 = vsub.s32 1, %v210
    %v212 = vrot.slane %v203, %v211
    %v213 = vlaneseq
    %v214 = vshrl.u32 %v213, 7
    %v215 = vsub.s32 2, %v214
    %v216 = vrot.slane %v203, %v215
    %v217 = vlaneseq
    %v218 = vshrl.u32 %v217, 7
    %v219 = vsub.s32 3, %v218
    %v220 = vrot.slane %v203, %v219
    %v221 = vlaneseq
    %v222 = vshrl.u32 %v221, 7
    %v223 = vsub.s32 4, %v222
    %v224 = vrot.slane %v203, %v223
    %v225 = vlaneseq
    %v226 = vshrl.u32 %v225, 7
    %v227 = vsub.s32 5, %v226
    %v228 = vrot.slane %v203, %v227
    %v229 = vlaneseq
    %v230 = vshrl.u32 %v229, 7
    %v231 = vsub.s32 6, %v230
    %v232 = vrot.slane %v203, %v231
    %v233 = vlaneseq
    %v234 = vshrl.u32 %v233, 7
    %v235 = vsub.s32 7, %v234
    %v236 = vrot.slane %v203, %v235
    %v237 = vcombine.low %v208, %v212
    %v238 = vcombine.low %v216, %v220
    %v240 = vunpack.c.l.s4 1983009808
    %v241 = vunpack.c.0.s8 %v240
    %v242 = vlaneseq
    %v243 = vshrl.u32 %v242, 7
    %v244 = vsub.s32 %v241, %v243
    %v245 = vrot.slane %v237, %v244
    %v247 = vunpack.c.l.s4 1983009808
    %v248 = vunpack.c.0.s8 %v247
    %v249 = vlaneseq
    %v250 = vshrl.u32 %v249, 7
    %v251 = vsub.s32 %v248, %v250
    %v252 = vrot.slane %v238, %v251
    %v253 = vcombine.low %v245, %v252
    %v254 = vcombine.low %v224, %v228
    %v255 = vcombine.low %v232, %v236
    %v257 = vunpack.c.l.s4 1983009808
    %v258 = vunpack.c.0.s8 %v257
    %v259 = vlaneseq
    %v260 = vshrl.u32 %v259, 7
    %v261 = vsub.s32 %v258, %v260
    %v262 = vrot.slane %v254, %v261
    %v264 = vunpack.c.l.s4 1983009808
    %v265 = vunpack.c.0.s8 %v264
    %v266 = vlaneseq
    %v267 = vshrl.u32 %v266, 7
    %v268 = vsub.s32 %v265, %v267
    %v269 = vrot.slane %v255, %v268
    %v270 = vcombine.low %v262, %v269
    %v273 = vmul.f32 %v201, %v253
    %v274 = vmul.f32 %v202, %v270
    %v275 = vld [vmem:[#allocation7] sm:$0xff]
    %v277 = vlaneseq
    %v278 = vshrl.u32 %v277, 7
    %v279 = vsub.s32 0, %v278
    %v280 = vrot.slane %v275, %v279
    %v281 = vlaneseq
    %v282 = vshrl.u32 %v281, 7
    %v283 = vsub.s32 1, %v282
    %v284 = vrot.slane %v275, %v283
    %v285 = vlaneseq
    %v286 = vshrl.u32 %v285, 7
    %v287 = vsub.s32 2, %v286
    %v288 = vrot.slane %v275, %v287
    %v289 = vlaneseq
    %v290 = vshrl.u32 %v289, 7
    %v291 = vsub.s32 3, %v290
    %v292 = vrot.slane %v275, %v291
    %v293 = vlaneseq
    %v294 = vshrl.u32 %v293, 7
    %v295 = vsub.s32 4, %v294
    %v296 = vrot.slane %v275, %v295
    %v297 = vlaneseq
    %v298 = vshrl.u32 %v297, 7
    %v299 = vsub.s32 5, %v298
    %v300 = vrot.slane %v275, %v299
    %v301 = vlaneseq
    %v302 = vshrl.u32 %v301, 7
    %v303 = vsub.s32 6, %v302
    %v304 = vrot.slane %v275, %v303
    %v305 = vlaneseq
    %v306 = vshrl.u32 %v305, 7
    %v307 = vsub.s32 7, %v306
    %v308 = vrot.slane %v275, %v307
    %v309 = vcombine.low %v280, %v284
    %v310 = vcombine.low %v288, %v292
    %v312 = vunpack.c.l.s4 1983009808
    %v313 = vunpack.c.0.s8 %v312
    %v314 = vlaneseq
    %v315 = vshrl.u32 %v314, 7
    %v316 = vsub.s32 %v313, %v315
    %v317 = vrot.slane %v309, %v316
    %v319 = vunpack.c.l.s4 1983009808
    %v320 = vunpack.c.0.s8 %v319
    %v321 = vlaneseq
    %v322 = vshrl.u32 %v321, 7
    %v323 = vsub.s32 %v320, %v322
    %v324 = vrot.slane %v310, %v323
    %v325 = vcombine.low %v317, %v324
    %v326 = vcombine.low %v296, %v300
    %v327 = vcombine.low %v304, %v308
    %v329 = vunpack.c.l.s4 1983009808
    %v330 = vunpack.c.0.s8 %v329
    %v331 = vlaneseq
    %v332 = vshrl.u32 %v331, 7
    %v333 = vsub.s32 %v330, %v332
    %v334 = vrot.slane %v326, %v333
    %v336 = vunpack.c.l.s4 1983009808
    %v337 = vunpack.c.0.s8 %v336
    %v338 = vlaneseq
    %v339 = vshrl.u32 %v338, 7
    %v340 = vsub.s32 %v337, %v339
    %v341 = vrot.slane %v327, %v340
    %v342 = vcombine.low %v334, %v341
    %v345 = vadd.f32 %v273, %v325
    %v346 = vadd.f32 %v274, %v342
    %347 = vst [vmem:[#allocation8] sm:$0xff] %v345
    %348 = vst [vmem:[#allocation8 + $0x8] sm:$0xff] %v346
    // Predicated region
    $region26: #{tpu_custom_call.1} parent=1 // pred_check
      _
    $region27: #{tpu_custom_call.1} parent=1 // pred_check_branch
      %350 = sbr.rel (0) target = $region29
    $region28: #{tpu_custom_call.1} parent=1 // pred_region
      %s352 = ssub.s32 256, 256
      %353 = vsyncadd [#allocation4], %s352
      %s355 = sshll.u32 [#allocation8], 4
      %s356 = int_to_ptr.vmem [resolvable:$true] %s355
      %358 = dma.vmem_to_hbm [thread:$0]  %s356, 256, %s3, [#allocation4]
    $region29: #{tpu_custom_call.1} parent=1 // pred_fallthru
      _
    // Predicated region
    $region30: #{tpu_custom_call.1} parent=1 // pred_check
      _
    $region31: #{tpu_custom_call.1} parent=1 // pred_check_branch
      %360 = sbr.rel (0) target = $region33
    $region32: #{tpu_custom_call.1} parent=1 // pred_region
      %361 = dma.done [#allocation4], 256
    $region33: #{tpu_custom_call.1} parent=1 // pred_fallthru
      _
    %362 = vsyncpa [#allocation3], 1
    %363 = vsyncpa [#allocation6], 1
    %364 = vsyncpa [#allocation4], 1

</llo_original>
